<compile_context>
chip_gen: v7x
topology: tpu7x:2x2x1
jax: 0.10.0
libtpu: 0.0.40
codegen_flags: <defaults>
</compile_context>

<pallas_src>
import functools
import math

import jax
import jax.numpy as jnp
from jax.experimental import pallas as pl
from jax.experimental.pallas import tpu as pltpu


# -----------------------------------------------------------------------------
# Fused kernel: global average pool + conv1d(channels) + sigmoid + rescale.
# -----------------------------------------------------------------------------
def _eca_kernel(x_ref, w_ref, o_ref, pp_ref, *, inv_hw, k, pad):
    # x_ref : (Bt, C, HWp)      channels on sublanes, spatial on lanes
    # w_ref : (k,) f32 in SMEM  conv1d taps
    # o_ref : (Bt, C, HWp)
    # pp_ref: (Bt, C + 2*pad, 1) f32 VMEM scratch (zero-padded pooled column)
    C = x_ref.shape[1]
    x = x_ref[...]
    # Global average pool over the spatial (lane) axis; accumulate in f32 so
    # bf16 inputs stay accurate.  inv_hw uses the TRUE H*W (padding is zeros).
    pooled = jnp.sum(x.astype(jnp.float32), axis=-1, keepdims=True) * inv_hw

    # Zero-padded pooled column: pp[b, pad + c, 0] = pooled[b, c, 0].
    pp_ref[...] = jnp.zeros(pp_ref.shape, pp_ref.dtype)
    pp_ref[:, pad:pad + C, :] = pooled

    # k-tap conv over the channel (sublane) axis as k shifted multiply-adds
    # (static sublane-offset reads of the padded column) — no C x C matrix.
    att = w_ref[0] * pp_ref[:, 0:C, :]
    for j in range(1, k):
        att = att + w_ref[j] * pp_ref[:, j:j + C, :]
    att = jax.nn.sigmoid(att)                                   # EUP, f32

    # Channel-wise rescale (broadcast along lanes); multiply in the I/O dtype.
    o_ref[...] = (x * att.astype(x.dtype)).astype(o_ref.dtype)


def _choose_batch_tile(batch, per_image_bytes, target_bytes=4 << 20):
    """Largest divisor of `batch` whose block stays under ~target_bytes while
    keeping at least min(batch, 4) grid steps (pipeline overlap; feeds both
    TensorCores on v7x)."""
    max_bt_mem = max(1, target_bytes // max(per_image_bytes, 1))
    max_bt_grid = max(1, batch // min(batch, 4))
    cap = min(max_bt_mem, max_bt_grid, batch)
    bt = 1
    for d in range(1, cap + 1):
        if batch % d == 0:
            bt = d
    return bt


def _eca_pallas(x2d, w, *, hw_true, kernel_size, pad):
    # x2d: (B, C, HWp) with HWp a multiple of 128; w: (k,) f32
    B, C, HWp = x2d.shape
    elt = x2d.dtype.itemsize
    per_image = C * HWp * elt
    Bt = _choose_batch_tile(B, per_image)
    block_bytes = Bt * per_image
    # in + out, double-buffered, plus slack for the tiny scratch / SMEM.
    vmem_limit = int(min(max(4 * block_bytes + (2 << 20), 16 << 20), 100 << 20))

    kernel = functools.partial(
        _eca_kernel, inv_hw=1.0 / float(hw_true), k=kernel_size, pad=pad)

    cost = pl.CostEstimate(
        flops=2 * B * C * HWp + 2 * B * C * kernel_size,
        transcendentals=B * C,
        bytes_accessed=2 * B * C * HWp * elt + kernel_size * 4,
    )

    return pl.pallas_call(
        kernel,
        out_shape=jax.ShapeDtypeStruct((B, C, HWp), x2d.dtype),
        grid=(B // Bt,),
        in_specs=[
            pl.BlockSpec((Bt, C, HWp), lambda i: (i, 0, 0)),
            pl.BlockSpec(memory_space=pltpu.MemorySpace.SMEM),
        ],
        out_specs=pl.BlockSpec((Bt, C, HWp), lambda i: (i, 0, 0)),
        scratch_shapes=[pltpu.VMEM((Bt, C + 2 * pad, 1), jnp.float32)],
        compiler_params=pltpu.CompilerParams(
            dimension_semantics=("parallel",),
            vmem_limit_bytes=vmem_limit,
        ),
        cost_estimate=cost,
    )(x2d, w.astype(jnp.float32))


# -----------------------------------------------------------------------------
# Wrapper: keep NCHW, fold spatial to lanes, pad spatial to a multiple of 128.
# -----------------------------------------------------------------------------
@functools.partial(jax.jit, static_argnames=("kernel_size", "pad"))
def eca_forward(x_nchw, w, *, kernel_size, pad):
    B, C, H, W = x_nchw.shape
    HW = H * W
    HWp = max(128, ((HW + 127) // 128) * 128)       # lane-dense last dim
    x2d = x_nchw.reshape(B, C, HW)                  # free, contiguous reshape
    if HWp != HW:
        x2d = jnp.pad(x2d, ((0, 0), (0, 0), (0, HWp - HW)))
    out = _eca_pallas(x2d, w, hw_true=HW, kernel_size=kernel_size, pad=pad)
    if HWp != HW:
        out = out[:, :, :HW]
    return out.reshape(B, C, H, W)


# -----------------------------------------------------------------------------
# Pure-JAX reference (mirrors the PyTorch module) for correctness check.
# -----------------------------------------------------------------------------
def eca_reference(x_nchw, w, kernel_size, pad):
    B, C, H, W = x_nchw.shape
    pooled = jnp.mean(x_nchw, axis=(2, 3))                      # (B, C)
    pooled_p = jnp.pad(pooled, ((0, 0), (pad, pad)))
    att = sum(w[j] * pooled_p[:, j:j + C] for j in range(kernel_size))
    att = jax.nn.sigmoid(att)
    return x_nchw * att[:, :, None, None]


if __name__ == "__main__":
    key = jax.random.PRNGKey(0)
    k_x, k_w = jax.random.split(key)

    # Small shapes consistent with the module.  C=32 so the ECA formula gives
    # a non-trivial conv (kernel_size=3, padding=1); spatial 16x16, batch 2.
    B, C, H, W = 2, 32, 16, 16
    gamma, b = 2, 1
    k0 = int(abs((math.log(C, 2) + b) / gamma))
    kernel_size = k0 if k0 % 2 else k0 + 1
    pad = kernel_size // 2

    x = jax.random.normal(k_x, (B, C, H, W), jnp.float32)          # NCHW
    w = 0.5 * jax.random.normal(k_w, (kernel_size,), jnp.float32)  # conv taps

    # f32 path (matches the PyTorch module's default dtype).
    out = eca_forward(x, w, kernel_size=kernel_size, pad=pad)
    out = jax.block_until_ready(out)
    ref = eca_reference(x, w, kernel_size, pad)
    assert out.shape == (B, C, H, W), out.shape
    assert jnp.allclose(out, ref, atol=1e-4, rtol=1e-4), \
        float(jnp.max(jnp.abs(out - ref)))

    # bf16 I/O path (halves HBM traffic; pool/sigmoid still accumulate in f32).
    x_bf = x.astype(jnp.bfloat16)
    out_bf = eca_forward(x_bf, w, kernel_size=kernel_size, pad=pad)
    out_bf = jax.block_until_ready(out_bf)
    ref_bf = eca_reference(x_bf.astype(jnp.float32), w, kernel_size, pad)
    assert out_bf.dtype == jnp.bfloat16
    assert jnp.allclose(out_bf.astype(jnp.float32), ref_bf,
                        atol=5e-2, rtol=5e-2), \
        float(jnp.max(jnp.abs(out_bf.astype(jnp.float32) - ref_bf)))

    print("KERNEL_OK")
</pallas_src>

<mosaic_0001>
module attributes {stable_mosaic.version = 11 : i64} {
  func.func @_eca_kernel(%arg0: i32, %arg1: memref<1x32x256xf32, #tpu.memory_space<vmem>>, %arg2: memref<3xf32, #tpu.memory_space<smem>>, %arg3: memref<1x32x256xf32, #tpu.memory_space<vmem>>, %arg4: memref<1x34x1xf32, #tpu.memory_space<vmem>>) attributes {dimension_semantics = [#tpu.dimension_semantics<parallel>], iteration_bounds = array<i64: 2>, scalar_prefetch = 0 : i64, scratch_operands = 1 : i64, tpu.core_type = #tpu.core_type<tc>, window_params = [{transform_indices = @transform_0, window_bounds = array<i64: 1, 32, 256>}, {transform_indices = @transform_1, window_bounds = array<i64: 3>}, {transform_indices = @transform_2, window_bounds = array<i64: 1, 32, 256>}]} {
    %c0 = arith.constant 0 : index
    %c0_0 = arith.constant 0 : index
    %c0_1 = arith.constant 0 : index
    %0 = vector.load %arg1[%c0, %c0_0, %c0_1] : memref<1x32x256xf32, #tpu.memory_space<vmem>>, vector<1x32x256xf32>
    %cst = arith.constant dense<0.000000e+00> : vector<1x32xf32>
    %1 = vector.multi_reduction <add>, %0, %cst [2] : vector<1x32x256xf32> to vector<1x32xf32>
    %2 = vector.shape_cast %1 : vector<1x32xf32> to vector<1x32x1xf32>
    %cst_2 = arith.constant 3.906250e-03 : f32
    %3 = vector.broadcast %cst_2 : f32 to vector<1x32x1xf32>
    %4 = arith.mulf %2, %3 : vector<1x32x1xf32>
    %cst_3 = arith.constant 0.000000e+00 : f32
    %5 = vector.broadcast %cst_3 : f32 to vector<1x34x1xf32>
    %c0_4 = arith.constant 0 : index
    %c0_5 = arith.constant 0 : index
    %c0_6 = arith.constant 0 : index
    %6 = vector.load %arg4[%c0_4, %c0_5, %c0_6] : memref<1x34x1xf32, #tpu.memory_space<vmem>>, vector<1x34x1xf32>
    tpu.vector_store %arg4[%c0_4, %c0_5, %c0_6], %5 {strides = array<i32>} : memref<1x34x1xf32, #tpu.memory_space<vmem>>, vector<1x34x1xf32>,
    %c0_7 = arith.constant 0 : index
    %c1 = arith.constant 1 : index
    %c0_8 = arith.constant 0 : index
    %7 = vector.load %arg4[%c0_7, %c1, %c0_8] : memref<1x34x1xf32, #tpu.memory_space<vmem>>, vector<1x32x1xf32>
    tpu.vector_store %arg4[%c0_7, %c1, %c0_8], %4 {strides = array<i32>} : memref<1x34x1xf32, #tpu.memory_space<vmem>>, vector<1x32x1xf32>,
    %c0_9 = arith.constant 0 : index
    %8 = memref.load %arg2[%c0_9] : memref<3xf32, #tpu.memory_space<smem>>
    %c0_10 = arith.constant 0 : index
    %c0_11 = arith.constant 0 : index
    %c0_12 = arith.constant 0 : index
    %9 = vector.load %arg4[%c0_10, %c0_11, %c0_12] : memref<1x34x1xf32, #tpu.memory_space<vmem>>, vector<1x32x1xf32>
    %10 = vector.broadcast %8 : f32 to vector<1x32x1xf32>
    %11 = arith.mulf %10, %9 : vector<1x32x1xf32>
    %c1_13 = arith.constant 1 : index
    %12 = memref.load %arg2[%c1_13] : memref<3xf32, #tpu.memory_space<smem>>
    %c0_14 = arith.constant 0 : index
    %c1_15 = arith.constant 1 : index
    %c0_16 = arith.constant 0 : index
    %13 = vector.load %arg4[%c0_14, %c1_15, %c0_16] : memref<1x34x1xf32, #tpu.memory_space<vmem>>, vector<1x32x1xf32>
    %14 = vector.broadcast %12 : f32 to vector<1x32x1xf32>
    %15 = arith.mulf %14, %13 : vector<1x32x1xf32>
    %16 = arith.addf %11, %15 : vector<1x32x1xf32>
    %c2 = arith.constant 2 : index
    %17 = memref.load %arg2[%c2] : memref<3xf32, #tpu.memory_space<smem>>
    %c0_17 = arith.constant 0 : index
    %c2_18 = arith.constant 2 : index
    %c0_19 = arith.constant 0 : index
    %18 = vector.load %arg4[%c0_17, %c2_18, %c0_19] : memref<1x34x1xf32, #tpu.memory_space<vmem>>, vector<1x32x1xf32>
    %19 = vector.broadcast %17 : f32 to vector<1x32x1xf32>
    %20 = arith.mulf %19, %18 : vector<1x32x1xf32>
    %21 = arith.addf %16, %20 : vector<1x32x1xf32>
    %22 = arith.negf %21 : vector<1x32x1xf32>
    %23 = math.exp %22 : vector<1x32x1xf32>
    %cst_20 = arith.constant 1.000000e+00 : f32
    %24 = vector.broadcast %cst_20 : f32 to vector<1x32x1xf32>
    %25 = arith.addf %24, %23 : vector<1x32x1xf32>
    %26 = arith.divf %24, %25 : vector<1x32x1xf32>
    %27 = vector.broadcast %26 : vector<1x32x1xf32> to vector<1x32x256xf32>
    %28 = arith.mulf %0, %27 : vector<1x32x256xf32>
    %c0_21 = arith.constant 0 : index
    %c0_22 = arith.constant 0 : index
    %c0_23 = arith.constant 0 : index
    %29 = vector.load %arg3[%c0_21, %c0_22, %c0_23] : memref<1x32x256xf32, #tpu.memory_space<vmem>>, vector<1x32x256xf32>
    tpu.vector_store %arg3[%c0_21, %c0_22, %c0_23], %28 {strides = array<i32>} : memref<1x32x256xf32, #tpu.memory_space<vmem>>, vector<1x32x256xf32>,
    return
  }
  func.func @transform_0(%arg0: i32) -> (i32, i32, i32) {
    %c0_i32 = arith.constant 0 : i32
    %c0_i32_0 = arith.constant 0 : i32
    %c0_i32_1 = arith.constant 0 : i32
    return %arg0, %c0_i32, %c0_i32_0 : i32, i32, i32
  }
  func.func @transform_1(%arg0: i32) -> i32 {
    %c0_i32 = arith.constant 0 : i32
    %c0_i32_0 = arith.constant 0 : i32
    return %c0_i32 : i32
  }
  func.func @transform_2(%arg0: i32) -> (i32, i32, i32) {
    %c0_i32 = arith.constant 0 : i32
    %c0_i32_0 = arith.constant 0 : i32
    %c0_i32_1 = arith.constant 0 : i32
    return %arg0, %c0_i32, %c0_i32_0 : i32, i32, i32
  }
}

</mosaic_0001>

<llo_original>
// kernel: eca_forward.1
$region0: #{eca_forward.1}
  #allocation0 [shape = 'u32[]', space=smem, size = 0x4, offset = 0x4, fixed_abs, tag = 'smem constant byte address 0x4 - core index']
  #allocation1 [shape = 'u32[144,128]{1,0:T(1,128)}', space=vmem, size = 0x12000, scoped, tag = 'internal scratch']
  #allocation2 [shape = 'f32[1,34,1]{2,1,0:T(8,128)}', space=vmem, size = 0x5000, scoped, tag = 'scratch operand']
  %s0 = inlined_call_operand.vmem [shape: f32[2,32,256], index: 0, kind: input, shape index: {}]
  %s1 = inlined_call_operand.vmem [shape: f32[3], index: 1, kind: input, shape index: {}]
  %s2 = inlined_call_operand.vmem [shape: f32[2,32,256], index: 2, kind: output, shape index: {}]
  %s3 = sld [smem:[#allocation0]]
  $region45: #{eca_forward.1} parent=0
    _
  %s5 = ssub.s32 1, %s3
  %s6 = scalar_select 0, %s5, %s3
  $region1: #{eca_forward.1} parent=0
    #allocation3 [shape = 'u8[512]{0}', space=smem, size = 0x200, scoped, tag = 'input window, operand 1, single buffered']
    #allocation4 [shape = 's32[2]{0}', space=sflag, size = 0x8, scoped, tag = 'scoped memory for eca_forward.1']
    %7 = vsyncpa [#allocation4], 0
    loop: start=0, step=1, limit=4
    $region2: #{eca_forward.1} parent=1 // loop_pre_header
      _
    $region3: #{eca_forward.1} parent=1 // loop_header
      %s9 = sphi 0, %s13
      %p10 = scmp.ge.s32.totalorder %s9, 4
      %s19 = sphi 0, %s21
      %s22 = sphi 0, %s19
      %s23 = sphi 0, %s22
      %s39 = sphi 0, %s23
      %s43 = sphi 0, %s43
      %s45 = sphi 0, %s43
      %s46 = sphi 0, %s45
      %s60 = sphi 0, %s46
      %s66 = sphi 0, %s68
      %s69 = sphi 0, %s66
      %s70 = sphi 0, %s69
      %s86 = sphi 0, %s70
    $region4: #{eca_forward.1} parent=1 // loop_header_branch
      %12 = sbr.rel (%p10) target = $region8
    $region5: #{eca_forward.1} parent=1 // loop_body
      %s14 = ssub.s32 %s9, 1
      %s15 = ssub.s32 %s9, 2
      %s16 = sadd.s32 %s9, 1
      %s17 = ssub.s32 %s9, %s16
      %p18 = scmp.eq.s32.totalorder %s17, 0
      %s20 = sadd.s32 %s19, 1
      %s21 = scalar_select %p18, %s19, %s20
      %p24 = pneg %p18
      %p25 = scmp.eq.s32.totalorder %s9, 1
      %p26 = por %p24, %p25
      %p27 = scmp.ne.s32.totalorder %s19, %s22
      %p28 = scmp.eq.s32.totalorder %s9, 0
      %p29 = por %p27, %p28
      %p30 = scmp.ne.s32.totalorder %s19, %s22
      %p31 = scmp.eq.s32.totalorder %s14, 1
      %p32 = por %p30, %p31
      %p33 = scmp.ne.s32.totalorder %s22, %s23
      %p34 = scmp.eq.s32.totalorder %s14, 0
      %p35 = por %p33, %p34
      %p36 = scmp.ne.s32.totalorder %s22, %s23
      %p37 = scmp.eq.s32.totalorder %s15, 1
      %p38 = por %p36, %p37
      %p40 = scmp.ne.s32.totalorder %s23, %s39
      %p41 = scmp.eq.s32.totalorder %s15, 0
      %p42 = por %p40, %p41
      %s44 = sadd.s32 %s43, 1
      %p47 = scmp.eq.s32.totalorder %s9, 1
      %p48 = scmp.ne.s32.totalorder %s43, %s45
      %p49 = scmp.eq.s32.totalorder %s9, 0
      %p50 = por %p48, %p49
      %p51 = scmp.ne.s32.totalorder %s43, %s45
      %p52 = scmp.eq.s32.totalorder %s14, 1
      %p53 = por %p51, %p52
      %p54 = scmp.ne.s32.totalorder %s45, %s46
      %p55 = scmp.eq.s32.totalorder %s14, 0
      %p56 = por %p54, %p55
      %p57 = scmp.ne.s32.totalorder %s45, %s46
      %p58 = scmp.eq.s32.totalorder %s15, 1
      %p59 = por %p57, %p58
      %p61 = scmp.ne.s32.totalorder %s46, %s60
      %p62 = scmp.eq.s32.totalorder %s15, 0
      %p63 = por %p61, %p62
      %s64 = ssub.s32 %s9, %s16
      %p65 = scmp.eq.s32.totalorder %s64, 0
      %s67 = sadd.s32 %s66, 1
      %s68 = scalar_select %p65, %s66, %s67
      %p71 = pneg %p65
      %p72 = scmp.eq.s32.totalorder %s9, 1
      %p73 = por %p71, %p72
      %p74 = scmp.ne.s32.totalorder %s66, %s69
      %p75 = scmp.eq.s32.totalorder %s9, 0
      %p76 = por %p74, %p75
      %p77 = scmp.ne.s32.totalorder %s66, %s69
      %p78 = scmp.eq.s32.totalorder %s14, 1
      %p79 = por %p77, %p78
      %p80 = scmp.ne.s32.totalorder %s69, %s70
      %p81 = scmp.eq.s32.totalorder %s14, 0
      %p82 = por %p80, %p81
      %p83 = scmp.ne.s32.totalorder %s69, %s70
      %p84 = scmp.eq.s32.totalorder %s15, 1
      %p85 = por %p83, %p84
      %p87 = scmp.ne.s32.totalorder %s70, %s86
      %p88 = scmp.eq.s32.totalorder %s15, 0
      %p89 = por %p87, %p88
      %p90 = scmp.le.s32.totalorder 1, %s9
      %p91 = scmp.lt.s32.totalorder %s9, 3
      %p92 = pnand %p90, %p91
      %p93 = pneg %p92
      // Predicated region
      $region9: #{eca_forward.1} parent=5 // pred_check
        _
      $region10: #{eca_forward.1} parent=5 // pred_check_branch
        %95 = sbr.rel (%p92) target = $region12
      $region11: #{eca_forward.1} parent=5 // pred_region
        %s96 = ssub.s32 %s9, 1
        // Predicated region
        $region13: #{eca_forward.1} parent=11 // pred_check
          %p97 = pneg %p56
        $region14: #{eca_forward.1} parent=11 // pred_check_branch
          %99 = sbr.rel (%p97) target = $region16
        $region15: #{eca_forward.1} parent=11 // pred_region
          %s101 = ssub.s32 16, 16
          %102 = vsyncadd [#allocation4], %s101
          %s104 = sshll.u32 %s1, 4
          %s105 = int_to_ptr.vmem [resolvable:$true] %s104
          %107 = dma.vmem_to_smem %s105, 16, [#allocation3], [#allocation4]
        $region16: #{eca_forward.1} parent=11 // pred_fallthru
          _
      $region12: #{eca_forward.1} parent=5 // pred_fallthru
        _
      %p108 = scmp.lt.s32.totalorder %s9, 2
      // Predicated region
      $region17: #{eca_forward.1} parent=5 // pred_check
        %p109 = pneg %p108
      $region18: #{eca_forward.1} parent=5 // pred_check_branch
        %111 = sbr.rel (%p109) target = $region20
      $region19: #{eca_forward.1} parent=5 // pred_region
        // Predicated region
        $region21: #{eca_forward.1} parent=19 // pred_check
          %p112 = pneg %p29
        $region22: #{eca_forward.1} parent=19 // pred_check_branch
          %114 = sbr.rel (%p112) target = $region24
        $region23: #{eca_forward.1} parent=19 // pred_region
          %p115 = scmp.lt.s32.totalorder %s9, 1
          %s116 = scalar_select %p115, %s9, 1
          %s117 = smul.addr %s116, 8
          %s118 = smul.addr %s117, 8
          %s119 = scalar_lea.vmem %s0, %s118
        $region24: #{eca_forward.1} parent=19 // pred_fallthru
          _
      $region20: #{eca_forward.1} parent=5 // pred_fallthru
        _
      %p120 = scmp.le.s32.totalorder 1, %s9
      %p121 = scmp.lt.s32.totalorder %s9, 3
      %p122 = pnand %p120, %p121
      %p123 = pneg %p122
      // Predicated region
      $region25: #{eca_forward.1} parent=5 // pred_check
        _
      $region26: #{eca_forward.1} parent=5 // pred_check_branch
        %125 = sbr.rel (%p122) target = $region28
      $region27: #{eca_forward.1} parent=5 // pred_region
        %s126 = ssub.s32 %s9, 1
        // Predicated region
        $region29: #{eca_forward.1} parent=27 // pred_check
          %p127 = pneg %p56
        $region30: #{eca_forward.1} parent=27 // pred_check_branch
          %129 = sbr.rel (%p127) target = $region32
        $region31: #{eca_forward.1} parent=27 // pred_region
          %130 = dma.done [#allocation4], 16
        $region32: #{eca_forward.1} parent=27 // pred_fallthru
          _
        %131 = sfence
        %p132 = scmp.lt.s32.totalorder %s14, 1
        %s133 = scalar_select %p132, %s14, 1
        %s134 = smul.addr %s133, 8
        %s135 = smul.addr %s134, 8
        %s136 = scalar_lea.vmem %s0, %s135
        %p137 = pneg %p35
        %p138 = pneg %p32
        %p139 = pneg %p56
        %p140 = pneg %p53
        %p141 = pneg %p82
        %p142 = pneg %p79
        %p143 = scmp.lt.s32.totalorder %s14, 1
        %s144 = scalar_select %p143, %s14, 1
        %s145 = smul.addr %s144, 8
        %s146 = smul.addr %s145, 8
        %s147 = scalar_lea.vmem %s2, %s146
        %p148 = scmp.lt.s32.totalorder %s14, 1
        %s149 = scalar_select %p148, %s14, 1
        %s150 = smul.addr %s149, 8
        %s151 = smul.addr %s150, 8
        %s152 = scalar_lea.vmem %s0, %s151
        %p153 = scmp.lt.s32.totalorder %s14, 1
        %s154 = scalar_select %p153, %s14, 1
        %s155 = smul.addr %s154, 8
        %s156 = smul.addr %s155, 8
        %s157 = scalar_lea.vmem %s2, %s156
        %v158 = vld [vmem:[%s152] sm:$0xff]
        %v159 = vld [vmem:[%s152 + $0x8] sm:$0xff]
        %v160 = vld [vmem:[%s152 + $0x10] sm:$0xff]
        %v161 = vld [vmem:[%s152 + $0x18] sm:$0xff]
        %v162 = vld [vmem:[%s152 + $0x20] sm:$0xff]
        %v163 = vld [vmem:[%s152 + $0x28] sm:$0xff]
        %v164 = vld [vmem:[%s152 + $0x30] sm:$0xff]
        %v165 = vld [vmem:[%s152 + $0x38] sm:$0xff]
        %v166 = vadd.f32 %v158, %v159
        %167 = vadd.xlane.f32.xlu0 %v166
        %v168 = vpop.xlane.xlu0 %167
        %v169 = vadd.f32 %v160, %v161
        %170 = vadd.xlane.f32.xlu0 %v169
        %v171 = vpop.xlane.xlu0 %170
        %v172 = vadd.f32 %v162, %v163
        %173 = vadd.xlane.f32.xlu0 %v172
        %v174 = vpop.xlane.xlu0 %173
        %v175 = vadd.f32 %v164, %v165
        %176 = vadd.xlane.f32.xlu0 %v175
        %v177 = vpop.xlane.xlu0 %176
        %v178 = vmul.f32 %v168, 0.00390625
        %v179 = vmul.f32 %v171, 0.00390625
        %v180 = vmul.f32 %v174, 0.00390625
        %v181 = vmul.f32 %v177, 0.00390625
        %vm182 = vcmask 7168
        %183 = vst.msk [vmem:[#allocation2] sm:$0xff] %vm182, 0.0
        %184 = vst.msk [vmem:[#allocation2 + $0x8] sm:$0xff] %vm182, 0.0
        %185 = vst.msk [vmem:[#allocation2 + $0x10] sm:$0xff] %vm182, 0.0
        %186 = vst.msk [vmem:[#allocation2 + $0x18] sm:$0xff] %vm182, 0.0
        %vm187 = vcmask 1024
        %188 = vst.msk [vmem:[#allocation2 + $0x20] sm:$0x3] %vm187, 0.0
        %189 = vst.msk [vmem:[#allocation2 + $0x1] sm:$0xff] %vm182, %v178
        %190 = vst.msk [vmem:[#allocation2 + $0x9] sm:$0xff] %vm182, %v179
        %191 = vst.msk [vmem:[#allocation2 + $0x11] sm:$0xff] %vm182, %v180
        %192 = vst.msk [vmem:[#allocation2 + $0x19] sm:$0xff] %vm182, %v181
        %s193 = sld [smem:[#allocation3]]
        %v194 = vld [vmem:[#allocation2] sm:$0xff]
        %v195 = vld [vmem:[#allocation2 + $0x8] sm:$0xff]
        %v196 = vld [vmem:[#allocation2 + $0x10] sm:$0xff]
        %v197 = vld [vmem:[#allocation2 + $0x18] sm:$0xff]
        %v198 = vstv %s193
        %v199 = vmul.f32 %v198, %v194
        %v200 = vmul.f32 %v198, %v195
        %v201 = vmul.f32 %v198, %v196
        %v202 = vmul.f32 %v198, %v197
        %s203 = sld [smem:[#allocation3 + $0x1]]
        %v204 = vld [vmem:[#allocation2 + $0x1] sm:$0xff]
        %v205 = vld [vmem:[#allocation2 + $0x9] sm:$0xff]
        %v206 = vld [vmem:[#allocation2 + $0x11] sm:$0xff]
        %v207 = vld [vmem:[#allocation2 + $0x19] sm:$0xff]
        %v208 = vstv %s203
        %v209 = vmul.f32 %v208, %v204
        %v210 = vmul.f32 %v208, %v205
        %v211 = vmul.f32 %v208, %v206
        %v212 = vmul.f32 %v208, %v207
        %v213 = vadd.f32 %v199, %v209
        %v214 = vadd.f32 %v200, %v210
        %v215 = vadd.f32 %v201, %v211
        %v216 = vadd.f32 %v202, %v212
        %s217 = sld [smem:[#allocation3 + $0x2]]
        %v218 = vld [vmem:[#allocation2 + $0x2] sm:$0xff]
        %v219 = vld [vmem:[#allocation2 + $0xa] sm:$0xff]
        %v220 = vld [vmem:[#allocation2 + $0x12] sm:$0xff]
        %v221 = vld [vmem:[#allocation2 + $0x1a] sm:$0xff]
        %v222 = vstv %s217
        %v223 = vmul.f32 %v222, %v218
        %v224 = vmul.f32 %v222, %v219
        %v225 = vmul.f32 %v222, %v220
        %v226 = vmul.f32 %v222, %v221
        %v227 = vadd.f32 %v213, %v223
        %v228 = vadd.f32 %v214, %v224
        %v229 = vadd.f32 %v215, %v225
        %v230 = vadd.f32 %v216, %v226
        %v231 = vxor.u32 %v227, 2147483648
        %v232 = vxor.u32 %v228, 2147483648
        %v233 = vxor.u32 %v229, 2147483648
        %v234 = vxor.u32 %v230, 2147483648
        %v235 = vmul.f32 %v231, 1.442695
        %v236 = vpow.pop %v235
        %v237 = vmul.f32 %v232, 1.442695
        %v238 = vpow.pop %v237
        %v239 = vmul.f32 %v233, 1.442695
        %v240 = vpow.pop %v239
        %v241 = vmul.f32 %v234, 1.442695
        %v242 = vpow.pop %v241
        %v243 = vadd.f32 %v236, 1.0
        %v244 = vadd.f32 %v238, 1.0
        %v245 = vadd.f32 %v240, 1.0
        %v246 = vadd.f32 %v242, 1.0
        %v247 = vrcp.pop %v243
        %v248 = vmul.f32 1.0, %v247
        %v249 = vrcp.pop %v244
        %v250 = vmul.f32 1.0, %v249
        %v251 = vrcp.pop %v245
        %v252 = vmul.f32 1.0, %v251
        %v253 = vrcp.pop %v246
        %v254 = vmul.f32 1.0, %v253
        %256 = vset.pattern.permute.xlu0 0
        %257 = vperm.xlu0 %256, %v248
        %v258 = vpop.permute.xlu0 %257
        %261 = vset.pattern.permute.xlu0 0
        %262 = vperm.xlu0 %261, %v250
        %v263 = vpop.permute.xlu0 %262
        %266 = vset.pattern.permute.xlu0 0
        %267 = vperm.xlu0 %266, %v252
        %v268 = vpop.permute.xlu0 %267
        %271 = vset.pattern.permute.xlu0 0
        %272 = vperm.xlu0 %271, %v254
        %v273 = vpop.permute.xlu0 %272
        %v275 = vmul.f32 %v158, %v258
        %v276 = vmul.f32 %v159, %v258
        %v277 = vmul.f32 %v160, %v263
        %v278 = vmul.f32 %v161, %v263
        %v279 = vmul.f32 %v162, %v268
        %v280 = vmul.f32 %v163, %v268
        %v281 = vmul.f32 %v164, %v273
        %v282 = vmul.f32 %v165, %v273
        %283 = vst [vmem:[%s157] sm:$0xff] %v275
        %284 = vst [vmem:[%s157 + $0x8] sm:$0xff] %v276
        %285 = vst [vmem:[%s157 + $0x10] sm:$0xff] %v277
        %286 = vst [vmem:[%s157 + $0x18] sm:$0xff] %v278
        %287 = vst [vmem:[%s157 + $0x20] sm:$0xff] %v279
        %288 = vst [vmem:[%s157 + $0x28] sm:$0xff] %v280
        %289 = vst [vmem:[%s157 + $0x30] sm:$0xff] %v281
        %290 = vst [vmem:[%s157 + $0x38] sm:$0xff] %v282
        %p291 = scmp.lt.s32.totalorder %s14, 1
        %s292 = scalar_select %p291, %s14, 1
        %s293 = smul.addr %s292, 8
        %s294 = smul.addr %s293, 8
        %s295 = scalar_lea.vmem %s2, %s294
        // Predicated region
        $region33: #{eca_forward.1} parent=27 // pred_check
          %p296 = pneg %p79
        $region34: #{eca_forward.1} parent=27 // pred_check_branch
          %298 = sbr.rel (%p296) target = $region36
        $region35: #{eca_forward.1} parent=27 // pred_region
          _
        $region36: #{eca_forward.1} parent=27 // pred_fallthru
          _
      $region28: #{eca_forward.1} parent=5 // pred_fallthru
        _
      %p299 = scmp.le.s32.totalorder 2, %s9
      // Predicated region
      $region37: #{eca_forward.1} parent=5 // pred_check
        %p300 = pneg %p299
      $region38: #{eca_forward.1} parent=5 // pred_check_branch
        %302 = sbr.rel (%p300) target = $region40
      $region39: #{eca_forward.1} parent=5 // pred_region
        %s303 = ssub.s32 %s9, 2
        // Predicated region
        $region41: #{eca_forward.1} parent=39 // pred_check
          %p304 = pneg %p85
        $region42: #{eca_forward.1} parent=39 // pred_check_branch
          %306 = sbr.rel (%p304) target = $region44
        $region43: #{eca_forward.1} parent=39 // pred_region
          %p307 = scmp.lt.s32.totalorder %s15, 1
          %s308 = scalar_select %p307, %s15, 1
          %s309 = smul.addr %s308, 8
          %s310 = smul.addr %s309, 8
          %s311 = scalar_lea.vmem %s2, %s310
        $region44: #{eca_forward.1} parent=39 // pred_fallthru
          _
      $region40: #{eca_forward.1} parent=5 // pred_fallthru
        _
    $region6: #{eca_forward.1} parent=1 // loop_footer
      %s13 = sadd.s32 1, %s9
    $region7: #{eca_forward.1} parent=1 // loop_footer_branch
      %8 = sbr.rel target = $region3
    $region8: #{eca_forward.1} parent=1 // loop_exit
      _
    %312 = vsyncpa [#allocation4], 1
    %s313 = scalar_lea.sflag [#allocation4], 1
    %314 = vsyncpa %s313, 1

</llo_original>
